<compile_context>
chip_gen: v5e
topology: v5e:2x2
jax: 0.10.0
libtpu: 0.0.40
codegen_flags: <defaults>
</compile_context>

<pallas_src>
import jax
import jax.numpy as jnp
from jax.experimental import pallas as pl
from jax.experimental.pallas import tpu as pltpu


def _round_up(x, m):
    return ((x + m - 1) // m) * m


def _pick_tm(batch, tm_max, sub_m):
    """Pick (tm_eff, M_padded) avoiding padding a ragged batch to a full tile."""
    m_pad = _round_up(batch, sub_m)
    if m_pad <= tm_max:
        return m_pad, m_pad
    # Prefer the largest sublane-multiple <= tm_max that divides the padded
    # batch (no wasted M rows); fall back to tile-padding if it would be tiny.
    d = (tm_max // sub_m) * sub_m
    while d >= sub_m:
        if m_pad % d == 0:
            break
        d -= sub_m
    if d >= min(128, m_pad):
        return d, m_pad
    tm_eff = (tm_max // sub_m) * sub_m
    return tm_eff, _round_up(m_pad, tm_eff)


def lin_kernel(x_ref, w_ref, b_ref, o_ref):
    """One (tm, tn) output tile; k (grid axis 2) is the innermost reduction.

    o_ref's block index is constant over k, so it stays VMEM-resident and is
    used directly as the f32 accumulator (no scratch); the bias add is fused
    into the k == 0 initialization.
    """
    k = pl.program_id(2)

    @pl.when(k == 0)
    def _():
        o_ref[...] = jnp.broadcast_to(b_ref[...], o_ref.shape).astype(o_ref.dtype)

    o_ref[...] += jnp.dot(
        x_ref[...], w_ref[...], preferred_element_type=jnp.float32
    )


class PallasLin:
    """Pallas-TPU equivalent of the PyTorch `Lin` module (forward only)."""

    def __init__(self, w, b, *, tm=512, tn=512, tk=512, use_bf16=True,
                 buffer_depth=2, vmem_limit_bytes=None):
        self.Din, self.Dout = w.shape
        self.use_bf16 = use_bf16
        self.tm = tm
        self.buffer_depth = buffer_depth
        self.vmem_limit_bytes = vmem_limit_bytes

        self.tk = min(tk, _round_up(self.Din, 128))
        self.tn = min(tn, _round_up(self.Dout, 128))
        self.K = _round_up(self.Din, self.tk)
        self.N = _round_up(self.Dout, self.tn)

        # One-time weight pad / cast (hoisted out of the per-forward path).
        w_prep = w.astype(jnp.bfloat16) if use_bf16 else w
        self.w_padded = jnp.pad(
            w_prep, ((0, self.K - self.Din), (0, self.N - self.Dout))
        )
        self.b_padded = jnp.pad(
            b.astype(jnp.float32), (0, self.N - self.Dout)
        ).reshape(1, self.N)

    def __call__(self, inp):
        return self.forward(inp)

    def forward(self, inp):
        B, Din = inp.shape
        assert Din == self.Din, f"expected Din={self.Din}, got {Din}"

        # bf16 packs 2 rows per sublane -> keep M a multiple of 16 under bf16.
        sub_m = 16 if self.use_bf16 else 8
        tm_eff, M = _pick_tm(B, self.tm, sub_m)

        tn_eff, tk_eff, K, N = self.tn, self.tk, self.K, self.N

        # Keep at least 2 blocks on a "parallel" axis so v7x's two TensorCores
        # both get work; prefer splitting N (stores stay lane-dense).
        if M // tm_eff == 1 and N // tn_eff == 1 and N % 256 == 0:
            tn_eff = N // 2

        x = inp.astype(jnp.bfloat16) if self.use_bf16 else inp
        if M != B or K != Din:
            # Zero padding along K contributes nothing to the dot product.
            x = jnp.pad(x, ((0, M - B), (0, K - Din)))

        grid = (M // tm_eff, N // tn_eff, K // tk_eff)

        elem = 2 if self.use_bf16 else 4
        # Account for re-streaming: x is re-read once per N block, w once per
        # M block.
        bytes_accessed = (
            elem * M * K * grid[1]
            + elem * K * N * grid[0]
            + 4 * N * grid[0]
            + 4 * M * N
        )
        flops = 2 * M * K * N

        x_spec_kwargs = {}
        w_spec_kwargs = {}
        if self.buffer_depth != 2:
            x_spec_kwargs["pipeline_mode"] = pl.Buffered(self.buffer_depth)
            w_spec_kwargs["pipeline_mode"] = pl.Buffered(self.buffer_depth)

        compiler_kwargs = dict(
            dimension_semantics=("parallel", "parallel", "arbitrary")
        )
        if self.vmem_limit_bytes is not None:
            compiler_kwargs["vmem_limit_bytes"] = self.vmem_limit_bytes

        out_padded = pl.pallas_call(
            lin_kernel,
            out_shape=jax.ShapeDtypeStruct((M, N), jnp.float32),
            grid_spec=pltpu.PrefetchScalarGridSpec(
                num_scalar_prefetch=0,
                grid=grid,
                in_specs=[
                    pl.BlockSpec((tm_eff, tk_eff), lambda i, j, k: (i, k),
                                 **x_spec_kwargs),
                    pl.BlockSpec((tk_eff, tn_eff), lambda i, j, k: (k, j),
                                 **w_spec_kwargs),
                    pl.BlockSpec((1, tn_eff), lambda i, j, k: (0, j)),
                ],
                out_specs=pl.BlockSpec((tm_eff, tn_eff), lambda i, j, k: (i, j)),
            ),
            compiler_params=pltpu.CompilerParams(**compiler_kwargs),
            cost_estimate=pl.CostEstimate(
                flops=flops, transcendentals=0, bytes_accessed=bytes_accessed
            ),
        )(x, self.w_padded, self.b_padded)

        if M != B or N != self.Dout:
            out_padded = out_padded[:B, :self.Dout]
        return out_padded


if __name__ == "__main__":
    key = jax.random.PRNGKey(0)
    k_x, k_w, k_b, k_x2, k_w2, k_b2 = jax.random.split(key, 6)

    # Small shapes consistent with the tutorial module.
    B, Din, Dout = 8, 32, 64
    x = jax.random.normal(k_x, (B, Din), dtype=jnp.float32)
    w = jax.random.normal(k_w, (Din, Dout), dtype=jnp.float32) * 0.1
    b = jax.random.normal(k_b, (Dout,), dtype=jnp.float32) * 0.1
    ref = x @ w + b

    # Exact-parity f32 path.
    lin_f32 = PallasLin(w, b, use_bf16=False)
    out = jax.block_until_ready(lin_f32(x))
    assert out.shape == (B, Dout)
    assert jnp.allclose(out, ref, atol=1e-5, rtol=1e-5)

    # Default bf16-operand / f32-accumulate fast path (looser tolerance since
    # operands are rounded to bf16 even though accumulation stays f32).
    lin_bf16 = PallasLin(w, b)
    out_bf16 = jax.block_until_ready(lin_bf16(x))
    assert out_bf16.shape == (B, Dout)
    assert jnp.allclose(out_bf16, ref, atol=1e-2, rtol=1e-2)

    # Multi-block grid (2 N blocks x 3 K steps) with a ragged batch to
    # exercise the snug-tm selection and the k-accumulation path.
    B2, Din2, Dout2 = 20, 384, 256
    x2 = jax.random.normal(k_x2, (B2, Din2), dtype=jnp.float32)
    w2 = jax.random.normal(k_w2, (Din2, Dout2), dtype=jnp.float32) * 0.05
    b2 = jax.random.normal(k_b2, (Dout2,), dtype=jnp.float32) * 0.05
    ref2 = jax.lax.dot(x2, w2, precision=jax.lax.Precision.HIGHEST) + b2

    lin2 = PallasLin(w2, b2, tm=256, tn=128, tk=128, use_bf16=False)
    out2 = jax.block_until_ready(lin2(x2))
    assert out2.shape == (B2, Dout2)
    assert jnp.allclose(out2, ref2, atol=2e-2, rtol=2e-2)

    print("KERNEL_OK")
</pallas_src>

<mosaic_0001>
module attributes {stable_mosaic.version = 11 : i64} {
  func.func @lin_kernel(%arg0: i32, %arg1: i32, %arg2: i32, %arg3: memref<8x128xf32, #tpu.memory_space<vmem>>, %arg4: memref<128x128xf32, #tpu.memory_space<vmem>>, %arg5: memref<1x128xf32, #tpu.memory_space<vmem>>, %arg6: memref<8x128xf32, #tpu.memory_space<vmem>>) attributes {dimension_semantics = [#tpu.dimension_semantics<parallel>, #tpu.dimension_semantics<parallel>, #tpu.dimension_semantics<arbitrary>], iteration_bounds = array<i64: 1, 1, 1>, scalar_prefetch = 0 : i64, scratch_operands = 0 : i64, tpu.core_type = #tpu.core_type<tc>, window_params = [{transform_indices = @transform_0, window_bounds = array<i64: 8, 128>}, {transform_indices = @transform_1, window_bounds = array<i64: 128, 128>}, {transform_indices = @transform_2, window_bounds = array<i64: 1, 128>}, {transform_indices = @transform_3, window_bounds = array<i64: 8, 128>}]} {
    %c0_i32 = arith.constant 0 : i32
    %0 = arith.cmpi eq, %arg2, %c0_i32 : i32
    %1 = arith.extui %0 : i1 to i32
    %c0_i32_0 = arith.constant 0 : i32
    %2 = arith.cmpi ne, %1, %c0_i32_0 : i32
    scf.if %2 {
      %c0_8 = arith.constant 0 : index
      %c0_9 = arith.constant 0 : index
      %9 = vector.load %arg5[%c0_8, %c0_9] : memref<1x128xf32, #tpu.memory_space<vmem>>, vector<1x128xf32>
      %10 = vector.shape_cast %9 : vector<1x128xf32> to vector<1x128xf32>
      %11 = vector.broadcast %10 : vector<1x128xf32> to vector<8x128xf32>
      %c0_10 = arith.constant 0 : index
      %c0_11 = arith.constant 0 : index
      %12 = vector.load %arg6[%c0_10, %c0_11] : memref<8x128xf32, #tpu.memory_space<vmem>>, vector<8x128xf32>
      tpu.vector_store %arg6[%c0_10, %c0_11], %11 {strides = array<i32>} : memref<8x128xf32, #tpu.memory_space<vmem>>, vector<8x128xf32>,
    } else {
    }
    %c0 = arith.constant 0 : index
    %c0_1 = arith.constant 0 : index
    %3 = vector.load %arg6[%c0, %c0_1] : memref<8x128xf32, #tpu.memory_space<vmem>>, vector<8x128xf32>
    %c0_2 = arith.constant 0 : index
    %c0_3 = arith.constant 0 : index
    %4 = vector.load %arg3[%c0_2, %c0_3] : memref<8x128xf32, #tpu.memory_space<vmem>>, vector<8x128xf32>
    %c0_4 = arith.constant 0 : index
    %c0_5 = arith.constant 0 : index
    %5 = vector.load %arg4[%c0_4, %c0_5] : memref<128x128xf32, #tpu.memory_space<vmem>>, vector<128x128xf32>
    %cst = arith.constant dense<0.000000e+00> : vector<8x128xf32>
    %6 = tpu.matmul %4, %5, %cst {dimension_numbers = #tpu.dot_dimension_numbers<[1], [0], [0], [1], [0, 0, 1, 1], [], []>} : vector<8x128xf32>, vector<128x128xf32>, vector<8x128xf32> -> vector<8x128xf32>
    %7 = arith.addf %3, %6 : vector<8x128xf32>
    %c0_6 = arith.constant 0 : index
    %c0_7 = arith.constant 0 : index
    %8 = vector.load %arg6[%c0_6, %c0_7] : memref<8x128xf32, #tpu.memory_space<vmem>>, vector<8x128xf32>
    tpu.vector_store %arg6[%c0_6, %c0_7], %7 {strides = array<i32>} : memref<8x128xf32, #tpu.memory_space<vmem>>, vector<8x128xf32>,
    return
  }
  func.func @transform_0(%arg0: i32, %arg1: i32, %arg2: i32) -> (i32, i32) {
    %c0_i32 = arith.constant 0 : i32
    return %arg0, %arg2 : i32, i32
  }
  func.func @transform_1(%arg0: i32, %arg1: i32, %arg2: i32) -> (i32, i32) {
    %c0_i32 = arith.constant 0 : i32
    return %arg2, %arg1 : i32, i32
  }
  func.func @transform_2(%arg0: i32, %arg1: i32, %arg2: i32) -> (i32, i32) {
    %c0_i32 = arith.constant 0 : i32
    %c0_i32_0 = arith.constant 0 : i32
    return %c0_i32, %arg1 : i32, i32
  }
  func.func @transform_3(%arg0: i32, %arg1: i32, %arg2: i32) -> (i32, i32) {
    %c0_i32 = arith.constant 0 : i32
    return %arg0, %arg1 : i32, i32
  }
}

</mosaic_0001>

<llo_original>
// kernel: tpu_custom_call.1
$region0: #{tpu_custom_call.1}
  #allocation0 [shape = 'u32[]', space=smem, size = 0x4, offset = 0x4, fixed_abs, tag = 'smem constant byte address 0x4 - core index']
  #allocation1 [shape = 'u32[72,128]{1,0:T(1,128)}', space=vmem, size = 0x9000, scoped, tag = 'internal scratch']
  %s0 = inlined_call_operand.hbm [shape: f32[8,128], index: 0, kind: input, shape index: {}]
  %s1 = inlined_call_operand.hbm [shape: f32[128,128], index: 1, kind: input, shape index: {}]
  %s2 = inlined_call_operand.vmem [shape: f32[1,128], index: 2, kind: input, shape index: {}]
  %s3 = inlined_call_operand.hbm [shape: f32[8,128], index: 3, kind: output, shape index: {}]
  %s4 = sld [smem:[#allocation0]]
  $region34: #{tpu_custom_call.1} parent=0
    _
  %s6 = ssub.s32 1, %s4
  %s7 = scalar_select 0, %s6, %s4
  $region1: #{tpu_custom_call.1} parent=0
    #allocation2 [shape = 'u8[4096]{0}', space=vmem, size = 0x1000, scoped, tag = 'input window, operand 0, single buffered']
    #allocation3 [shape = 's32[1]{0}', space=sflag, size = 0x4, scoped, tag = 'scoped memory for tpu_custom_call.1']
    #allocation4 [shape = 's32[1]{0}', space=sflag, size = 0x4, scoped, tag = 'scoped memory for tpu_custom_call.1']
    #allocation5 [shape = 'u8[65536]{0}', space=vmem, size = 0x10000, scoped, tag = 'input window, operand 1, single buffered']
    #allocation6 [shape = 's32[1]{0}', space=sflag, size = 0x4, scoped, tag = 'scoped memory for tpu_custom_call.1']
    #allocation7 [shape = 'u8[4096]{0}', space=vmem, size = 0x1000, scoped, tag = 'output window, operand 0, single buffered']
    %8 = vsyncpa [#allocation3], 0
    %9 = vsyncpa [#allocation6], 0
    %10 = vsyncpa [#allocation4], 0
    // Predicated region
    $region2: #{tpu_custom_call.1} parent=1 // pred_check
      _
    $region3: #{tpu_custom_call.1} parent=1 // pred_check_branch
      %12 = sbr.rel (0) target = $region5
    $region4: #{tpu_custom_call.1} parent=1 // pred_region
      %14 = vsyncadd [#allocation3], 0
      %s16 = sshll.u32 %s0, 4
      %s17 = int_to_ptr.hbm [resolvable:$true] %s16
      %s18 = sshll.u32 [#allocation2], 4
      %s19 = int_to_ptr.vmem [resolvable:$true] %s18
      %21 = dma.hbm_to_vmem [thread:$0]  %s17, 128, %s19, [#allocation3]
    $region5: #{tpu_custom_call.1} parent=1 // pred_fallthru
      _
    // Predicated region
    $region6: #{tpu_custom_call.1} parent=1 // pred_check
      _
    $region7: #{tpu_custom_call.1} parent=1 // pred_check_branch
      %23 = sbr.rel (0) target = $region9
    $region8: #{tpu_custom_call.1} parent=1 // pred_region
      %25 = vsyncadd [#allocation6], 0
      %s26 = sshll.u32 %s1, 4
      %s27 = int_to_ptr.hbm [resolvable:$true] %s26
      %s28 = sshll.u32 [#allocation5], 4
      %s29 = int_to_ptr.vmem [resolvable:$true] %s28
      %34 = dma.hbm_to_vmem [thread:$0]  %s27, 2048, %s29, [#allocation6], 128, 128, 8
    $region9: #{tpu_custom_call.1} parent=1 // pred_fallthru
      _
    // Predicated region
    $region10: #{tpu_custom_call.1} parent=1 // pred_check
      _
    $region11: #{tpu_custom_call.1} parent=1 // pred_check_branch
      %36 = sbr.rel (0) target = $region13
    $region12: #{tpu_custom_call.1} parent=1 // pred_region
      _
    $region13: #{tpu_custom_call.1} parent=1 // pred_fallthru
      _
    // Predicated region
    $region14: #{tpu_custom_call.1} parent=1 // pred_check
      _
    $region15: #{tpu_custom_call.1} parent=1 // pred_check_branch
      %38 = sbr.rel (0) target = $region17
    $region16: #{tpu_custom_call.1} parent=1 // pred_region
      %40 = dma.done [#allocation3], 128
    $region17: #{tpu_custom_call.1} parent=1 // pred_fallthru
      _
    // Predicated region
    $region18: #{tpu_custom_call.1} parent=1 // pred_check
      _
    $region19: #{tpu_custom_call.1} parent=1 // pred_check_branch
      %42 = sbr.rel (0) target = $region21
    $region20: #{tpu_custom_call.1} parent=1 // pred_region
      %44 = dma.done [#allocation6], 2048
    $region21: #{tpu_custom_call.1} parent=1 // pred_fallthru
      _
    %p45 = scmp.eq.s32.totalorder 0, 0
    // Predicated region
    $region22: #{tpu_custom_call.1} parent=1 // pred_check
      %p46 = pneg %p45
    $region23: #{tpu_custom_call.1} parent=1 // pred_check_branch
      %48 = sbr.rel (%p46) target = $region25
    $region24: #{tpu_custom_call.1} parent=1 // pred_region
      %v49 = vld [vmem:[%s2] sm:$0x1]
      %v51 = vperm.slane %v49, 0
      %53 = vst [vmem:[#allocation7] sm:$0xff] %v51
    $region25: #{tpu_custom_call.1} parent=1 // pred_fallthru
      _
    %v54 = vld [vmem:[#allocation7] sm:$0xff]
    %v55 = vld [vmem:[#allocation2] sm:$0xff]
    %v56 = vld [vmem:[#allocation5] sm:$0xff]
    %v57 = vld [vmem:[#allocation5 + $0x8] sm:$0xff]
    %v58 = vld [vmem:[#allocation5 + $0x10] sm:$0xff]
    %v59 = vld [vmem:[#allocation5 + $0x18] sm:$0xff]
    %v60 = vld [vmem:[#allocation5 + $0x20] sm:$0xff]
    %v61 = vld [vmem:[#allocation5 + $0x28] sm:$0xff]
    %v62 = vld [vmem:[#allocation5 + $0x30] sm:$0xff]
    %v63 = vld [vmem:[#allocation5 + $0x38] sm:$0xff]
    %v64 = vld [vmem:[#allocation5 + $0x40] sm:$0xff]
    %v65 = vld [vmem:[#allocation5 + $0x48] sm:$0xff]
    %v66 = vld [vmem:[#allocation5 + $0x50] sm:$0xff]
    %v67 = vld [vmem:[#allocation5 + $0x58] sm:$0xff]
    %v68 = vld [vmem:[#allocation5 + $0x60] sm:$0xff]
    %v69 = vld [vmem:[#allocation5 + $0x68] sm:$0xff]
    %v70 = vld [vmem:[#allocation5 + $0x70] sm:$0xff]
    %v71 = vld [vmem:[#allocation5 + $0x78] sm:$0xff]
    %72 = vmatpush.msra.mxu0 %v71
    %73 = vmatpush.msra.mxu0 %v70
    %74 = vmatpush.msra.mxu0 %v69
    %75 = vmatpush.msra.mxu0 %v68
    %76 = vmatpush.msra.mxu0 %v67
    %77 = vmatpush.msra.mxu0 %v66
    %78 = vmatpush.msra.mxu0 %v65
    %79 = vmatpush.msra.mxu0 %v64
    %80 = vmatpush.msra.mxu0 %v63
    %81 = vmatpush.msra.mxu0 %v62
    %82 = vmatpush.msra.mxu0 %v61
    %83 = vmatpush.msra.mxu0 %v60
    %84 = vmatpush.msra.mxu0 %v59
    %85 = vmatpush.msra.mxu0 %v58
    %86 = vmatpush.msra.mxu0 %v57
    %87 = vmatpush.msra.mxu0 %v56
    %88 = vmatmul.f32.gmra.mxu0 %v55
    %v89 = vpop.f32.mrf.mxu0
    %v90 = vadd.f32 0.0, %v89
    %91 = vdwg.mxu0
    %v92 = vadd.f32 %v54, %v90
    %93 = vst [vmem:[#allocation7] sm:$0xff] %v92
    // Predicated region
    $region26: #{tpu_custom_call.1} parent=1 // pred_check
      _
    $region27: #{tpu_custom_call.1} parent=1 // pred_check_branch
      %95 = sbr.rel (0) target = $region29
    $region28: #{tpu_custom_call.1} parent=1 // pred_region
      %97 = vsyncadd [#allocation4], 0
      %s99 = sshll.u32 [#allocation7], 4
      %s100 = int_to_ptr.vmem [resolvable:$true] %s99
      %s101 = sshll.u32 %s3, 4
      %s102 = int_to_ptr.hbm [resolvable:$true] %s101
      %104 = dma.vmem_to_hbm [thread:$0]  %s100, 128, %s102, [#allocation4]
    $region29: #{tpu_custom_call.1} parent=1 // pred_fallthru
      _
    // Predicated region
    $region30: #{tpu_custom_call.1} parent=1 // pred_check
      _
    $region31: #{tpu_custom_call.1} parent=1 // pred_check_branch
      %106 = sbr.rel (0) target = $region33
    $region32: #{tpu_custom_call.1} parent=1 // pred_region
      %108 = dma.done [#allocation4], 128
    $region33: #{tpu_custom_call.1} parent=1 // pred_fallthru
      _
    %109 = vsyncpa [#allocation3], 1
    %110 = vsyncpa [#allocation6], 1
    %111 = vsyncpa [#allocation4], 1

</llo_original>
